<compile_context>
chip_gen: v7x
topology: tpu7x:2x2x1
jax: 0.10.0
libtpu: 0.0.40
codegen_flags: <defaults>
</compile_context>

<pallas_src>
import jax
import jax.numpy as jnp
from jax.experimental import pallas as pl
from jax.experimental.pallas import tpu as pltpu

BN_EPS = 1e-5        # nn.BatchNorm1d default eps
NORM_EPS = 1e-12     # F.normalize default eps


def _bnneck_kernel(x_ref, gamma_ref, beta_ref, fc_ref, feat_ref, logits_ref):
    """One grid step == a block of Pt parts.

    x_ref:      (Pt, n, c)        input slab for these parts
    gamma_ref:  (Pt, 1, c)        BN scale
    beta_ref:   (Pt, 1, c)        BN shift
    fc_ref:     (Pt, c, cls_pad)  fc_bin slab (cls zero-padded to lane multiple)
    feat_ref:   (Pt, n, c)        normalized feature out
    logits_ref: (Pt, n, cls_pad)  logits out (f32, lane-dense)
    """
    x = x_ref[...].astype(jnp.float32)          # [Pt, n, c]
    gamma = gamma_ref[...].astype(jnp.float32)  # [Pt, 1, c]
    beta = beta_ref[...].astype(jnp.float32)    # [Pt, 1, c]

    # BatchNorm1d, training-mode batch statistics (biased variance), affine.
    # One-pass variance: E[x^2] - mean^2 (clamped for numerical safety).
    inv_n = 1.0 / x.shape[1]
    mean = jnp.sum(x, axis=1, keepdims=True) * inv_n
    ex2 = jnp.sum(x * x, axis=1, keepdims=True) * inv_n
    var = jnp.maximum(ex2 - mean * mean, 0.0)
    y = (x - mean) * jax.lax.rsqrt(var + BN_EPS) * gamma + beta

    # F.normalize(feature, dim=-1) via rsqrt-multiply (EUP).
    f_ss = jnp.sum(y * y, axis=-1, keepdims=True)
    feat = y * jax.lax.rsqrt(jnp.maximum(f_ss, NORM_EPS * NORM_EPS))

    # F.normalize(fc_bin, dim=1): normalize over in_channels (rows). Zero-padded
    # class columns stay exactly zero (0 * rsqrt(eps^2) == 0).
    w = fc_ref[...].astype(jnp.float32)         # [Pt, c, cls_pad]
    w_ss = jnp.sum(w * w, axis=1, keepdims=True)
    w = w * jax.lax.rsqrt(jnp.maximum(w_ss, NORM_EPS * NORM_EPS))

    # Per-part batched matmul on the MXU. (Keep f32 operands for exact parity;
    # cast to bf16 here if the surrounding model is bf16-tolerant.)
    logits = jnp.einsum('pnc,pck->pnk', feat, w,
                        preferred_element_type=jnp.float32)

    feat_ref[...] = feat.astype(feat_ref.dtype)
    logits_ref[...] = logits  # f32 out


def _largest_fitting_part_block(p, per_part_bytes, budget_bytes):
    """Largest divisor Pt of p whose double-buffered blocks fit the VMEM budget."""
    for pt in range(p, 0, -1):
        if p % pt == 0 and 2 * pt * per_part_bytes <= budget_bytes:
            return pt
    return 1


def separate_bnnecks(x, fc_bin, bn_gamma, bn_beta,
                     *, vmem_budget_bytes=24 * 1024 * 1024):
    """x: [n, c, p]; fc_bin: [p, c, class_num]; bn_gamma/bn_beta: [c*p] (c-major)."""
    n, c, p = x.shape
    cls = fc_bin.shape[-1]

    # Lane-dense logits: pad class_num up to a multiple of 128 for the kernel,
    # slice back afterwards.
    cls_pad = pl.cdiv(cls, 128) * 128

    # f32 bytes touched per part per step (in blocks + out blocks); x2 for the
    # pipeline's double buffering. Budgeted below the 32 MiB scoped default so
    # it is safe on v5e/v6e (128 MiB physical) and v7x (64 MiB physical).
    per_part_bytes = (n * c          # x block
                      + 2 * c        # gamma + beta
                      + c * cls_pad  # fc slab
                      + n * c        # feat out
                      + n * cls_pad  # logits out
                      ) * 4
    pt = _largest_fitting_part_block(p, per_part_bytes, vmem_budget_bytes)
    num_blocks = p // pt
    # TODO(synk): for very large class_num (e.g. OUMVLP ~5k) where even Pt=1
    # exceeds the budget, additionally tile the class axis.

    # Glue: per-part views. x -> [p, n, c]; BN params -> [p, 1, c]; pad fc_bin.
    x_pnc = jnp.transpose(x, (2, 0, 1))
    gamma_p = jnp.transpose(bn_gamma.reshape(c, p), (1, 0)).reshape(p, 1, c)
    beta_p = jnp.transpose(bn_beta.reshape(c, p), (1, 0)).reshape(p, 1, c)
    fc_pad = fc_bin if cls_pad == cls else jnp.pad(
        fc_bin, ((0, 0), (0, 0), (0, cls_pad - cls)))

    feat_pnc, logits_pnk = pl.pallas_call(
        _bnneck_kernel,
        out_shape=(jax.ShapeDtypeStruct((p, n, c), x.dtype),
                   jax.ShapeDtypeStruct((p, n, cls_pad), jnp.float32)),
        grid_spec=pltpu.PrefetchScalarGridSpec(
            num_scalar_prefetch=0,
            grid=(num_blocks,),
            in_specs=[
                pl.BlockSpec((pt, n, c), lambda i: (i, 0, 0)),
                pl.BlockSpec((pt, 1, c), lambda i: (i, 0, 0)),
                pl.BlockSpec((pt, 1, c), lambda i: (i, 0, 0)),
                pl.BlockSpec((pt, c, cls_pad), lambda i: (i, 0, 0)),
            ],
            out_specs=[
                pl.BlockSpec((pt, n, c), lambda i: (i, 0, 0)),
                pl.BlockSpec((pt, n, cls_pad), lambda i: (i, 0, 0)),
            ],
        ),
        compiler_params=pltpu.CompilerParams(
            # parts are fully independent -> shard across TCs on v7x
            dimension_semantics=("parallel",),
            vmem_limit_bytes=32 * 1024 * 1024,
        ),
    )(x_pnc, gamma_p, beta_p, fc_pad)

    # Restore the PyTorch module's output layout [n, c, p] / [n, class_num, p].
    # (Consumers that accept [p, n, c] / [p, n, cls] can skip these transposes.)
    feature = jnp.transpose(feat_pnc, (1, 2, 0))
    logits = jnp.transpose(logits_pnk[..., :cls], (1, 2, 0))
    return feature, logits


def _reference_forward(x, fc_bin, bn_gamma, bn_beta):
    """Pure-JAX mirror of the PyTorch forward, for correctness checking."""
    n, c, p = x.shape
    xf = x.reshape(n, c * p)
    mean = jnp.mean(xf, axis=0)
    var = jnp.mean((xf - mean) ** 2, axis=0)
    xf = (xf - mean) / jnp.sqrt(var + BN_EPS) * bn_gamma + bn_beta
    xb = xf.reshape(n, c, p)
    feature = jnp.transpose(xb, (2, 0, 1))  # [p, n, c]
    feature = feature / jnp.maximum(
        jnp.linalg.norm(feature, axis=-1, keepdims=True), NORM_EPS)
    w = fc_bin / jnp.maximum(
        jnp.linalg.norm(fc_bin, axis=1, keepdims=True), NORM_EPS)
    logits = jnp.einsum('pnc,pck->pnk', feature, w)
    return jnp.transpose(feature, (1, 2, 0)), jnp.transpose(logits, (1, 2, 0))


if __name__ == "__main__":
    # Small shapes consistent with SeparateBNNecks(parts_num=8, in_channels=32, class_num=16)
    n, c, p, cls = 4, 32, 8, 16

    key = jax.random.PRNGKey(0)
    k_x, k_fc = jax.random.split(key)

    x = jax.random.normal(k_x, (n, c, p), dtype=jnp.float32)

    # Deterministic parameter init (mirrors module __init__):
    #   fc_bin: xavier_uniform on zeros(p, c, cls)
    fan_in, fan_out = c * cls, p * cls
    bound = (6.0 / (fan_in + fan_out)) ** 0.5
    fc_bin = jax.random.uniform(k_fc, (p, c, cls), minval=-bound, maxval=bound,
                                dtype=jnp.float32)
    #   BatchNorm1d(c*p): weight = ones, bias = zeros
    bn_gamma = jnp.ones((c * p,), dtype=jnp.float32)
    bn_beta = jnp.zeros((c * p,), dtype=jnp.float32)

    feature, logits = separate_bnnecks(x, fc_bin, bn_gamma, bn_beta)
    feature = jax.block_until_ready(feature)
    logits = jax.block_until_ready(logits)

    ref_feature, ref_logits = _reference_forward(x, fc_bin, bn_gamma, bn_beta)

    assert feature.shape == (n, c, p)
    assert logits.shape == (n, cls, p)
    assert jnp.allclose(feature, ref_feature, atol=1e-5, rtol=1e-5)
    assert jnp.allclose(logits, ref_logits, atol=1e-5, rtol=1e-5)

    print("KERNEL_OK")
</pallas_src>

<mosaic_0001>
module attributes {stable_mosaic.version = 11 : i64} {
  func.func @_bnneck_kernel(%arg0: i32, %arg1: memref<8x4x32xf32, #tpu.memory_space<vmem>>, %arg2: memref<8x1x32xf32, #tpu.memory_space<vmem>>, %arg3: memref<8x1x32xf32, #tpu.memory_space<vmem>>, %arg4: memref<8x32x128xf32, #tpu.memory_space<vmem>>, %arg5: memref<8x4x32xf32, #tpu.memory_space<vmem>>, %arg6: memref<8x4x128xf32, #tpu.memory_space<vmem>>) attributes {dimension_semantics = [#tpu.dimension_semantics<parallel>], iteration_bounds = array<i64: 1>, scalar_prefetch = 0 : i64, scratch_operands = 0 : i64, tpu.core_type = #tpu.core_type<tc>, window_params = [{transform_indices = @transform_0, window_bounds = array<i64: 8, 4, 32>}, {transform_indices = @transform_1, window_bounds = array<i64: 8, 1, 32>}, {transform_indices = @transform_2, window_bounds = array<i64: 8, 1, 32>}, {transform_indices = @transform_3, window_bounds = array<i64: 8, 32, 128>}, {transform_indices = @transform_4, window_bounds = array<i64: 8, 4, 32>}, {transform_indices = @transform_5, window_bounds = array<i64: 8, 4, 128>}]} {
    %c0 = arith.constant 0 : index
    %c0_0 = arith.constant 0 : index
    %c0_1 = arith.constant 0 : index
    %0 = vector.load %arg1[%c0, %c0_0, %c0_1] : memref<8x4x32xf32, #tpu.memory_space<vmem>>, vector<8x4x32xf32>
    %c0_2 = arith.constant 0 : index
    %c0_3 = arith.constant 0 : index
    %c0_4 = arith.constant 0 : index
    %1 = vector.load %arg2[%c0_2, %c0_3, %c0_4] : memref<8x1x32xf32, #tpu.memory_space<vmem>>, vector<8x1x32xf32>
    %c0_5 = arith.constant 0 : index
    %c0_6 = arith.constant 0 : index
    %c0_7 = arith.constant 0 : index
    %2 = vector.load %arg3[%c0_5, %c0_6, %c0_7] : memref<8x1x32xf32, #tpu.memory_space<vmem>>, vector<8x1x32xf32>
    %cst = arith.constant dense<0.000000e+00> : vector<8x32xf32>
    %3 = vector.multi_reduction <add>, %0, %cst [1] : vector<8x4x32xf32> to vector<8x32xf32>
    %4 = vector.shape_cast %3 : vector<8x32xf32> to vector<8x1x32xf32>
    %cst_8 = arith.constant 2.500000e-01 : f32
    %5 = vector.broadcast %cst_8 : f32 to vector<8x1x32xf32>
    %6 = arith.mulf %4, %5 : vector<8x1x32xf32>
    %7 = arith.mulf %0, %0 : vector<8x4x32xf32>
    %cst_9 = arith.constant dense<0.000000e+00> : vector<8x32xf32>
    %8 = vector.multi_reduction <add>, %7, %cst_9 [1] : vector<8x4x32xf32> to vector<8x32xf32>
    %9 = vector.shape_cast %8 : vector<8x32xf32> to vector<8x1x32xf32>
    %cst_10 = arith.constant 2.500000e-01 : f32
    %10 = vector.broadcast %cst_10 : f32 to vector<8x1x32xf32>
    %11 = arith.mulf %9, %10 : vector<8x1x32xf32>
    %12 = arith.mulf %6, %6 : vector<8x1x32xf32>
    %13 = arith.subf %11, %12 : vector<8x1x32xf32>
    %cst_11 = arith.constant 0.000000e+00 : f32
    %14 = vector.broadcast %cst_11 : f32 to vector<8x1x32xf32>
    %15 = arith.maximumf %13, %14 : vector<8x1x32xf32>
    %16 = vector.broadcast %6 : vector<8x1x32xf32> to vector<8x4x32xf32>
    %17 = arith.subf %0, %16 : vector<8x4x32xf32>
    %cst_12 = arith.constant 9.99999974E-6 : f32
    %18 = vector.broadcast %cst_12 : f32 to vector<8x1x32xf32>
    %19 = arith.addf %15, %18 : vector<8x1x32xf32>
    %20 = math.rsqrt %19 : vector<8x1x32xf32>
    %21 = vector.broadcast %20 : vector<8x1x32xf32> to vector<8x4x32xf32>
    %22 = arith.mulf %17, %21 : vector<8x4x32xf32>
    %23 = vector.broadcast %1 : vector<8x1x32xf32> to vector<8x4x32xf32>
    %24 = arith.mulf %22, %23 : vector<8x4x32xf32>
    %25 = vector.broadcast %2 : vector<8x1x32xf32> to vector<8x4x32xf32>
    %26 = arith.addf %24, %25 : vector<8x4x32xf32>
    %27 = arith.mulf %26, %26 : vector<8x4x32xf32>
    %cst_13 = arith.constant dense<0.000000e+00> : vector<8x4xf32>
    %28 = vector.multi_reduction <add>, %27, %cst_13 [2] : vector<8x4x32xf32> to vector<8x4xf32>
    %29 = vector.shape_cast %28 : vector<8x4xf32> to vector<8x4x1xf32>
    %cst_14 = arith.constant 1.000000e-24 : f32
    %30 = vector.broadcast %cst_14 : f32 to vector<8x4x1xf32>
    %31 = arith.maximumf %29, %30 : vector<8x4x1xf32>
    %32 = math.rsqrt %31 : vector<8x4x1xf32>
    %33 = vector.broadcast %32 : vector<8x4x1xf32> to vector<8x4x32xf32>
    %34 = arith.mulf %26, %33 : vector<8x4x32xf32>
    %c0_15 = arith.constant 0 : index
    %c0_16 = arith.constant 0 : index
    %c0_17 = arith.constant 0 : index
    %35 = vector.load %arg4[%c0_15, %c0_16, %c0_17] : memref<8x32x128xf32, #tpu.memory_space<vmem>>, vector<8x32x128xf32>
    %36 = arith.mulf %35, %35 : vector<8x32x128xf32>
    %cst_18 = arith.constant dense<0.000000e+00> : vector<8x128xf32>
    %37 = vector.multi_reduction <add>, %36, %cst_18 [1] : vector<8x32x128xf32> to vector<8x128xf32>
    %38 = vector.shape_cast %37 : vector<8x128xf32> to vector<8x1x128xf32>
    %cst_19 = arith.constant 1.000000e-24 : f32
    %39 = vector.broadcast %cst_19 : f32 to vector<8x1x128xf32>
    %40 = arith.maximumf %38, %39 : vector<8x1x128xf32>
    %41 = math.rsqrt %40 : vector<8x1x128xf32>
    %42 = vector.broadcast %41 : vector<8x1x128xf32> to vector<8x32x128xf32>
    %43 = arith.mulf %35, %42 : vector<8x32x128xf32>
    "tpu.trace_start"() <{level = 10 : i32, message = "pnc,pck->pnk"}> : () -> ()
    %cst_20 = arith.constant dense<0.000000e+00> : vector<8x4x128xf32>
    %44 = tpu.matmul %34, %43, %cst_20 {dimension_numbers = #tpu.dot_dimension_numbers<[2], [1], [1], [2], [0, 0, 0, 1, 1, 2], [0], [0]>} : vector<8x4x32xf32>, vector<8x32x128xf32>, vector<8x4x128xf32> -> vector<8x4x128xf32>
    "tpu.trace_stop"() : () -> ()
    %c0_21 = arith.constant 0 : index
    %c0_22 = arith.constant 0 : index
    %c0_23 = arith.constant 0 : index
    %45 = vector.load %arg5[%c0_21, %c0_22, %c0_23] : memref<8x4x32xf32, #tpu.memory_space<vmem>>, vector<8x4x32xf32>
    tpu.vector_store %arg5[%c0_21, %c0_22, %c0_23], %34 {strides = array<i32>} : memref<8x4x32xf32, #tpu.memory_space<vmem>>, vector<8x4x32xf32>,
    %c0_24 = arith.constant 0 : index
    %c0_25 = arith.constant 0 : index
    %c0_26 = arith.constant 0 : index
    %46 = vector.load %arg6[%c0_24, %c0_25, %c0_26] : memref<8x4x128xf32, #tpu.memory_space<vmem>>, vector<8x4x128xf32>
    tpu.vector_store %arg6[%c0_24, %c0_25, %c0_26], %44 {strides = array<i32>} : memref<8x4x128xf32, #tpu.memory_space<vmem>>, vector<8x4x128xf32>,
    return
  }
  func.func @transform_0(%arg0: i32) -> (i32, i32, i32) {
    %c0_i32 = arith.constant 0 : i32
    %c0_i32_0 = arith.constant 0 : i32
    %c0_i32_1 = arith.constant 0 : i32
    return %arg0, %c0_i32, %c0_i32_0 : i32, i32, i32
  }
  func.func @transform_1(%arg0: i32) -> (i32, i32, i32) {
    %c0_i32 = arith.constant 0 : i32
    %c0_i32_0 = arith.constant 0 : i32
    %c0_i32_1 = arith.constant 0 : i32
    return %arg0, %c0_i32, %c0_i32_0 : i32, i32, i32
  }
  func.func @transform_2(%arg0: i32) -> (i32, i32, i32) {
    %c0_i32 = arith.constant 0 : i32
    %c0_i32_0 = arith.constant 0 : i32
    %c0_i32_1 = arith.constant 0 : i32
    return %arg0, %c0_i32, %c0_i32_0 : i32, i32, i32
  }
  func.func @transform_3(%arg0: i32) -> (i32, i32, i32) {
    %c0_i32 = arith.constant 0 : i32
    %c0_i32_0 = arith.constant 0 : i32
    %c0_i32_1 = arith.constant 0 : i32
    return %arg0, %c0_i32, %c0_i32_0 : i32, i32, i32
  }
  func.func @transform_4(%arg0: i32) -> (i32, i32, i32) {
    %c0_i32 = arith.constant 0 : i32
    %c0_i32_0 = arith.constant 0 : i32
    %c0_i32_1 = arith.constant 0 : i32
    return %arg0, %c0_i32, %c0_i32_0 : i32, i32, i32
  }
  func.func @transform_5(%arg0: i32) -> (i32, i32, i32) {
    %c0_i32 = arith.constant 0 : i32
    %c0_i32_0 = arith.constant 0 : i32
    %c0_i32_1 = arith.constant 0 : i32
    return %arg0, %c0_i32, %c0_i32_0 : i32, i32, i32
  }
}

</mosaic_0001>

<llo_original>
// kernel: tpu_custom_call.1
$region0: #{tpu_custom_call.1}
  #allocation0 [shape = 'u32[]', space=smem, size = 0x4, offset = 0x4, fixed_abs, tag = 'smem constant byte address 0x4 - core index']
  #allocation1 [shape = 'u32[144,128]{1,0:T(1,128)}', space=vmem, size = 0x12000, scoped, tag = 'internal scratch']
  %s0 = inlined_call_operand.hbm [shape: f32[8,4,32], index: 0, kind: input, shape index: {}]
  %s1 = inlined_call_operand.hbm [shape: f32[8,1,32], index: 1, kind: input, shape index: {}]
  %s2 = inlined_call_operand.hbm [shape: f32[8,1,32], index: 2, kind: input, shape index: {}]
  %s3 = inlined_call_operand.hbm [shape: f32[8,32,128], index: 3, kind: input, shape index: {}]
  %s4 = inlined_call_operand.hbm [shape: f32[8,4,32], index: 4, kind: output, shape index: {0}]
  %s5 = inlined_call_operand.hbm [shape: f32[8,4,128], index: 5, kind: output, shape index: {1}]
  %6 = xla_tuple %s4, %s5
  %s7 = sld [smem:[#allocation0]]
  $region50: #{tpu_custom_call.1} parent=0
    _
  %s9 = ssub.s32 1, %s7
  %s10 = scalar_select 0, %s9, %s7
  $region1: #{tpu_custom_call.1} parent=0
    #allocation2 [shape = 'u8[16384]{0}', space=vmem, size = 0x4000, scoped, tag = 'input window, operand 0, single buffered']
    #allocation3 [shape = 's32[1]{0}', space=sflag, size = 0x4, scoped, tag = 'scoped memory for tpu_custom_call.1']
    #allocation4 [shape = 's32[1]{0}', space=sflag, size = 0x4, scoped, tag = 'scoped memory for tpu_custom_call.1']
    #allocation5 [shape = 'u8[4096]{0}', space=vmem, size = 0x1000, scoped, tag = 'input window, operand 1, single buffered']
    #allocation6 [shape = 's32[1]{0}', space=sflag, size = 0x4, scoped, tag = 'scoped memory for tpu_custom_call.1']
    #allocation7 [shape = 'u8[4096]{0}', space=vmem, size = 0x1000, scoped, tag = 'input window, operand 2, single buffered']
    #allocation8 [shape = 'u8[131072]{0}', space=vmem, size = 0x20000, scoped, tag = 'input window, operand 3, single buffered']
    #allocation9 [shape = 's32[1]{0}', space=sflag, size = 0x4, scoped, tag = 'scoped memory for tpu_custom_call.1']
    #allocation10 [shape = 'u8[16384]{0}', space=vmem, size = 0x4000, scoped, tag = 'output window, operand 0, single buffered']
    #allocation11 [shape = 'u8[16384]{0}', space=vmem, size = 0x4000, scoped, tag = 'output window, operand 1, single buffered']
    #allocation12 [shape = 's32[1]{0}', space=sflag, size = 0x4, scoped, tag = 'scoped memory for tpu_custom_call.1']
    %11 = vsyncpa [#allocation3], 0
    %12 = vsyncpa [#allocation6], 0
    %13 = vsyncpa [#allocation9], 0
    %14 = vsyncpa [#allocation4], 0
    %15 = vsyncpa [#allocation12], 0
    // Predicated region
    $region2: #{tpu_custom_call.1} parent=1 // pred_check
      _
    $region3: #{tpu_custom_call.1} parent=1 // pred_check_branch
      %17 = sbr.rel (0) target = $region5
    $region4: #{tpu_custom_call.1} parent=1 // pred_region
      %s19 = ssub.s32 512, 512
      %20 = vsyncadd [#allocation3], %s19
      %s21 = sshll.u32 [#allocation2], 4
      %s22 = int_to_ptr.vmem [resolvable:$true] %s21
      %27 = dma.hbm_to_vmem [thread:$0]  %s0, 512, %s22, [#allocation3], 64, 64, 4
    $region5: #{tpu_custom_call.1} parent=1 // pred_fallthru
      _
    // Predicated region
    $region6: #{tpu_custom_call.1} parent=1 // pred_check
      _
    $region7: #{tpu_custom_call.1} parent=1 // pred_check_branch
      %29 = sbr.rel (0) target = $region9
    $region8: #{tpu_custom_call.1} parent=1 // pred_region
      %s31 = ssub.s32 128, 128
      %32 = vsyncadd [#allocation6], %s31
      %s33 = sshll.u32 [#allocation5], 4
      %s34 = int_to_ptr.vmem [resolvable:$true] %s33
      %39 = dma.hbm_to_vmem [thread:$0]  %s1, 128, %s34, [#allocation6], 16, 16, 1
    $region9: #{tpu_custom_call.1} parent=1 // pred_fallthru
      _
    // Predicated region
    $region10: #{tpu_custom_call.1} parent=1 // pred_check
      _
    $region11: #{tpu_custom_call.1} parent=1 // pred_check_branch
      %41 = sbr.rel (0) target = $region13
    $region12: #{tpu_custom_call.1} parent=1 // pred_region
      %s43 = ssub.s32 128, 128
      %44 = vsyncadd [#allocation6], %s43
      %s45 = sshll.u32 [#allocation7], 4
      %s46 = int_to_ptr.vmem [resolvable:$true] %s45
      %51 = dma.hbm_to_vmem [thread:$0]  %s2, 128, %s46, [#allocation6], 16, 16, 1
    $region13: #{tpu_custom_call.1} parent=1 // pred_fallthru
      _
    // Predicated region
    $region14: #{tpu_custom_call.1} parent=1 // pred_check
      _
    $region15: #{tpu_custom_call.1} parent=1 // pred_check_branch
      %53 = sbr.rel (0) target = $region17
    $region16: #{tpu_custom_call.1} parent=1 // pred_region
      %s55 = ssub.s32 4096, 4096
      %56 = vsyncadd [#allocation9], %s55
      %s57 = sshll.u32 [#allocation8], 4
      %s58 = int_to_ptr.vmem [resolvable:$true] %s57
      %63 = dma.hbm_to_vmem [thread:$0]  %s3, 4096, %s58, [#allocation9], 128, 128, 8
    $region17: #{tpu_custom_call.1} parent=1 // pred_fallthru
      _
    // Predicated region
    $region18: #{tpu_custom_call.1} parent=1 // pred_check
      _
    $region19: #{tpu_custom_call.1} parent=1 // pred_check_branch
      %65 = sbr.rel (0) target = $region21
    $region20: #{tpu_custom_call.1} parent=1 // pred_region
      %66 = dma.done [#allocation3], 512
    $region21: #{tpu_custom_call.1} parent=1 // pred_fallthru
      _
    // Predicated region
    $region22: #{tpu_custom_call.1} parent=1 // pred_check
      _
    $region23: #{tpu_custom_call.1} parent=1 // pred_check_branch
      %68 = sbr.rel (0) target = $region25
    $region24: #{tpu_custom_call.1} parent=1 // pred_region
      %69 = dma.done [#allocation6], 128
    $region25: #{tpu_custom_call.1} parent=1 // pred_fallthru
      _
    // Predicated region
    $region26: #{tpu_custom_call.1} parent=1 // pred_check
      _
    $region27: #{tpu_custom_call.1} parent=1 // pred_check_branch
      %71 = sbr.rel (0) target = $region29
    $region28: #{tpu_custom_call.1} parent=1 // pred_region
      %72 = dma.done [#allocation6], 128
    $region29: #{tpu_custom_call.1} parent=1 // pred_fallthru
      _
    // Predicated region
    $region30: #{tpu_custom_call.1} parent=1 // pred_check
      _
    $region31: #{tpu_custom_call.1} parent=1 // pred_check_branch
      %74 = sbr.rel (0) target = $region33
    $region32: #{tpu_custom_call.1} parent=1 // pred_region
      %75 = dma.done [#allocation9], 4096
    $region33: #{tpu_custom_call.1} parent=1 // pred_fallthru
      _
    %v76 = vld [vmem:[#allocation2] sm:$0xf]
    %v77 = vld [vmem:[#allocation2 + $0x4] sm:$0xf]
    %v78 = vld [vmem:[#allocation2 + $0x8] sm:$0xf]
    %v79 = vld [vmem:[#allocation2 + $0xc] sm:$0xf]
    %v80 = vld [vmem:[#allocation2 + $0x10] sm:$0xf]
    %v81 = vld [vmem:[#allocation2 + $0x14] sm:$0xf]
    %v82 = vld [vmem:[#allocation2 + $0x18] sm:$0xf]
    %v83 = vld [vmem:[#allocation2 + $0x1c] sm:$0xf]
    %v84 = vld [vmem:[#allocation5] sm:$0x1]
    %v85 = vld [vmem:[#allocation5 + $0x1] sm:$0x1]
    %v86 = vld [vmem:[#allocation5 + $0x2] sm:$0x1]
    %v87 = vld [vmem:[#allocation5 + $0x3] sm:$0x1]
    %v88 = vld [vmem:[#allocation5 + $0x4] sm:$0x1]
    %v89 = vld [vmem:[#allocation5 + $0x5] sm:$0x1]
    %v90 = vld [vmem:[#allocation5 + $0x6] sm:$0x1]
    %v91 = vld [vmem:[#allocation5 + $0x7] sm:$0x1]
    %v92 = vld [vmem:[#allocation7] sm:$0x1]
    %v93 = vld [vmem:[#allocation7 + $0x1] sm:$0x1]
    %v94 = vld [vmem:[#allocation7 + $0x2] sm:$0x1]
    %v95 = vld [vmem:[#allocation7 + $0x3] sm:$0x1]
    %v96 = vld [vmem:[#allocation7 + $0x4] sm:$0x1]
    %v97 = vld [vmem:[#allocation7 + $0x5] sm:$0x1]
    %v98 = vld [vmem:[#allocation7 + $0x6] sm:$0x1]
    %v99 = vld [vmem:[#allocation7 + $0x7] sm:$0x1]
    %vm100 = vcmask 257024
    %v101 = vsel %vm100, %v76, 0.0
    %v102 = vrot.slane %v101, 4
    %v103 = vadd.f32 %v101, %v102
    %v104 = vrot.slane %v103, 2
    %v105 = vadd.f32 %v103, %v104
    %v106 = vrot.slane %v105, 1
    %v107 = vadd.f32 %v105, %v106
    %v108 = vsel %vm100, %v77, 0.0
    %v109 = vrot.slane %v108, 4
    %v110 = vadd.f32 %v108, %v109
    %v111 = vrot.slane %v110, 2
    %v112 = vadd.f32 %v110, %v111
    %v113 = vrot.slane %v112, 1
    %v114 = vadd.f32 %v112, %v113
    %v115 = vsel %vm100, %v78, 0.0
    %v116 = vrot.slane %v115, 4
    %v117 = vadd.f32 %v115, %v116
    %v118 = vrot.slane %v117, 2
    %v119 = vadd.f32 %v117, %v118
    %v120 = vrot.slane %v119, 1
    %v121 = vadd.f32 %v119, %v120
    %v122 = vsel %vm100, %v79, 0.0
    %v123 = vrot.slane %v122, 4
    %v124 = vadd.f32 %v122, %v123
    %v125 = vrot.slane %v124, 2
    %v126 = vadd.f32 %v124, %v125
    %v127 = vrot.slane %v126, 1
    %v128 = vadd.f32 %v126, %v127
    %v129 = vsel %vm100, %v80, 0.0
    %v130 = vrot.slane %v129, 4
    %v131 = vadd.f32 %v129, %v130
    %v132 = vrot.slane %v131, 2
    %v133 = vadd.f32 %v131, %v132
    %v134 = vrot.slane %v133, 1
    %v135 = vadd.f32 %v133, %v134
    %v136 = vsel %vm100, %v81, 0.0
    %v137 = vrot.slane %v136, 4
    %v138 = vadd.f32 %v136, %v137
    %v139 = vrot.slane %v138, 2
    %v140 = vadd.f32 %v138, %v139
    %v141 = vrot.slane %v140, 1
    %v142 = vadd.f32 %v140, %v141
    %v143 = vsel %vm100, %v82, 0.0
    %v144 = vrot.slane %v143, 4
    %v145 = vadd.f32 %v143, %v144
    %v146 = vrot.slane %v145, 2
    %v147 = vadd.f32 %v145, %v146
    %v148 = vrot.slane %v147, 1
    %v149 = vadd.f32 %v147, %v148
    %v150 = vsel %vm100, %v83, 0.0
    %v151 = vrot.slane %v150, 4
    %v152 = vadd.f32 %v150, %v151
    %v153 = vrot.slane %v152, 2
    %v154 = vadd.f32 %v152, %v153
    %v155 = vrot.slane %v154, 1
    %v156 = vadd.f32 %v154, %v155
    %v157 = vmul.f32 %v107, 0.25
    %v158 = vmul.f32 %v114, 0.25
    %v159 = vmul.f32 %v121, 0.25
    %v160 = vmul.f32 %v128, 0.25
    %v161 = vmul.f32 %v135, 0.25
    %v162 = vmul.f32 %v142, 0.25
    %v163 = vmul.f32 %v149, 0.25
    %v164 = vmul.f32 %v156, 0.25
    %v165 = vmul.f32 %v76, %v76
    %v166 = vmul.f32 %v77, %v77
    %v167 = vmul.f32 %v78, %v78
    %v168 = vmul.f32 %v79, %v79
    %v169 = vmul.f32 %v80, %v80
    %v170 = vmul.f32 %v81, %v81
    %v171 = vmul.f32 %v82, %v82
    %v172 = vmul.f32 %v83, %v83
    %v173 = vsel %vm100, %v165, 0.0
    %v174 = vrot.slane %v173, 4
    %v175 = vadd.f32 %v173, %v174
    %v176 = vrot.slane %v175, 2
    %v177 = vadd.f32 %v175, %v176
    %v178 = vrot.slane %v177, 1
    %v179 = vadd.f32 %v177, %v178
    %v180 = vsel %vm100, %v166, 0.0
    %v181 = vrot.slane %v180, 4
    %v182 = vadd.f32 %v180, %v181
    %v183 = vrot.slane %v182, 2
    %v184 = vadd.f32 %v182, %v183
    %v185 = vrot.slane %v184, 1
    %v186 = vadd.f32 %v184, %v185
    %v187 = vsel %vm100, %v167, 0.0
    %v188 = vrot.slane %v187, 4
    %v189 = vadd.f32 %v187, %v188
    %v190 = vrot.slane %v189, 2
    %v191 = vadd.f32 %v189, %v190
    %v192 = vrot.slane %v191, 1
    %v193 = vadd.f32 %v191, %v192
    %v194 = vsel %vm100, %v168, 0.0
    %v195 = vrot.slane %v194, 4
    %v196 = vadd.f32 %v194, %v195
    %v197 = vrot.slane %v196, 2
    %v198 = vadd.f32 %v196, %v197
    %v199 = vrot.slane %v198, 1
    %v200 = vadd.f32 %v198, %v199
    %v201 = vsel %vm100, %v169, 0.0
    %v202 = vrot.slane %v201, 4
    %v203 = vadd.f32 %v201, %v202
    %v204 = vrot.slane %v203, 2
    %v205 = vadd.f32 %v203, %v204
    %v206 = vrot.slane %v205, 1
    %v207 = vadd.f32 %v205, %v206
    %v208 = vsel %vm100, %v170, 0.0
    %v209 = vrot.slane %v208, 4
    %v210 = vadd.f32 %v208, %v209
    %v211 = vrot.slane %v210, 2
    %v212 = vadd.f32 %v210, %v211
    %v213 = vrot.slane %v212, 1
    %v214 = vadd.f32 %v212, %v213
    %v215 = vsel %vm100, %v171, 0.0
    %v216 = vrot.slane %v215, 4
    %v217 = vadd.f32 %v215, %v216
    %v218 = vrot.slane %v217, 2
    %v219 = vadd.f32 %v217, %v218
    %v220 = vrot.slane %v219, 1
    %v221 = vadd.f32 %v219, %v220
    %v222 = vsel %vm100, %v172, 0.0
    %v223 = vrot.slane %v222, 4
    %v224 = vadd.f32 %v222, %v223
    %v225 = vrot.slane %v224, 2
    %v226 = vadd.f32 %v224, %v225
    %v227 = vrot.slane %v226, 1
    %v228 = vadd.f32 %v226, %v227
    %v229 = vmul.f32 %v179, 0.25
    %v230 = vmul.f32 %v186, 0.25
    %v231 = vmul.f32 %v193, 0.25
    %v232 = vmul.f32 %v200, 0.25
    %v233 = vmul.f32 %v207, 0.25
    %v234 = vmul.f32 %v214, 0.25
    %v235 = vmul.f32 %v221, 0.25
    %v236 = vmul.f32 %v228, 0.25
    %v237 = vmul.f32 %v157, %v157
    %v238 = vmul.f32 %v158, %v158
    %v239 = vmul.f32 %v159, %v159
    %v240 = vmul.f32 %v160, %v160
    %v241 = vmul.f32 %v161, %v161
    %v242 = vmul.f32 %v162, %v162
    %v243 = vmul.f32 %v163, %v163
    %v244 = vmul.f32 %v164, %v164
    %v245 = vsub.f32 %v229, %v237
    %v246 = vsub.f32 %v230, %v238
    %v247 = vsub.f32 %v231, %v239
    %v248 = vsub.f32 %v232, %v240
    %v249 = vsub.f32 %v233, %v241
    %v250 = vsub.f32 %v234, %v242
    %v251 = vsub.f32 %v235, %v243
    %v252 = vsub.f32 %v236, %v244
    %v253 = vmax.f32 %v245, 0.0
    %v254 = vmax.f32 %v246, 0.0
    %v255 = vmax.f32 %v247, 0.0
    %v256 = vmax.f32 %v248, 0.0
    %v257 = vmax.f32 %v249, 0.0
    %v258 = vmax.f32 %v250, 0.0
    %v259 = vmax.f32 %v251, 0.0
    %v260 = vmax.f32 %v252, 0.0
    %v261 = vsub.f32 %v76, %v157
    %v262 = vsub.f32 %v77, %v158
    %v263 = vsub.f32 %v78, %v159
    %v264 = vsub.f32 %v79, %v160
    %v265 = vsub.f32 %v80, %v161
    %v266 = vsub.f32 %v81, %v162
    %v267 = vsub.f32 %v82, %v163
    %v268 = vsub.f32 %v83, %v164
    %v269 = vadd.f32 %v253, 1e-05
    %v270 = vadd.f32 %v254, 1e-05
    %v271 = vadd.f32 %v255, 1e-05
    %v272 = vadd.f32 %v256, 1e-05
    %v273 = vadd.f32 %v257, 1e-05
    %v274 = vadd.f32 %v258, 1e-05
    %v275 = vadd.f32 %v259, 1e-05
    %v276 = vadd.f32 %v260, 1e-05
    %v277 = vrsqrt.pop %v269
    %v278 = vrsqrt.pop %v270
    %v279 = vrsqrt.pop %v271
    %v280 = vrsqrt.pop %v272
    %v281 = vrsqrt.pop %v273
    %v282 = vrsqrt.pop %v274
    %v283 = vrsqrt.pop %v275
    %v284 = vrsqrt.pop %v276
    %v285 = vmul.f32 %v261, %v277
    %v286 = vmul.f32 %v262, %v278
    %v287 = vmul.f32 %v263, %v279
    %v288 = vmul.f32 %v264, %v280
    %v289 = vmul.f32 %v265, %v281
    %v290 = vmul.f32 %v266, %v282
    %v291 = vmul.f32 %v267, %v283
    %v292 = vmul.f32 %v268, %v284
    %v301 = vlaneseq
    %v302 = vshrl.u32 %v301, 7
    %v303 = vsub.s32 0, %v302
    %v304 = vrot.slane %v84, %v303
    %v305 = vlaneseq
    %v306 = vshrl.u32 %v305, 7
    %v307 = vsub.s32 0, %v306
    %v308 = vrot.slane %v85, %v307
    %v309 = vlaneseq
    %v310 = vshrl.u32 %v309, 7
    %v311 = vsub.s32 0, %v310
    %v312 = vrot.slane %v86, %v311
    %v313 = vlaneseq
    %v314 = vshrl.u32 %v313, 7
    %v315 = vsub.s32 0, %v314
    %v316 = vrot.slane %v87, %v315
    %v317 = vlaneseq
    %v318 = vshrl.u32 %v317, 7
    %v319 = vsub.s32 0, %v318
    %v320 = vrot.slane %v88, %v319
    %v321 = vlaneseq
    %v322 = vshrl.u32 %v321, 7
    %v323 = vsub.s32 0, %v322
    %v324 = vrot.slane %v89, %v323
    %v325 = vlaneseq
    %v326 = vshrl.u32 %v325, 7
    %v327 = vsub.s32 0, %v326
    %v328 = vrot.slane %v90, %v327
    %v329 = vlaneseq
    %v330 = vshrl.u32 %v329, 7
    %v331 = vsub.s32 0, %v330
    %v332 = vrot.slane %v91, %v331
    %v341 = vmul.f32 %v285, %v304
    %v342 = vmul.f32 %v286, %v308
    %v343 = vmul.f32 %v287, %v312
    %v344 = vmul.f32 %v288, %v316
    %v345 = vmul.f32 %v289, %v320
    %v346 = vmul.f32 %v290, %v324
    %v347 = vmul.f32 %v291, %v328
    %v348 = vmul.f32 %v292, %v332
    %v357 = vlaneseq
    %v358 = vshrl.u32 %v357, 7
    %v359 = vsub.s32 0, %v358
    %v360 = vrot.slane %v92, %v359
    %v361 = vlaneseq
    %v362 = vshrl.u32 %v361, 7
    %v363 = vsub.s32 0, %v362
    %v364 = vrot.slane %v93, %v363
    %v365 = vlaneseq
    %v366 = vshrl.u32 %v365, 7
    %v367 = vsub.s32 0, %v366
    %v368 = vrot.slane %v94, %v367
    %v369 = vlaneseq
    %v370 = vshrl.u32 %v369, 7
    %v371 = vsub.s32 0, %v370
    %v372 = vrot.slane %v95, %v371
    %v373 = vlaneseq
    %v374 = vshrl.u32 %v373, 7
    %v375 = vsub.s32 0, %v374
    %v376 = vrot.slane %v96, %v375
    %v377 = vlaneseq
    %v378 = vshrl.u32 %v377, 7
    %v379 = vsub.s32 0, %v378
    %v380 = vrot.slane %v97, %v379
    %v381 = vlaneseq
    %v382 = vshrl.u32 %v381, 7
    %v383 = vsub.s32 0, %v382
    %v384 = vrot.slane %v98, %v383
    %v385 = vlaneseq
    %v386 = vshrl.u32 %v385, 7
    %v387 = vsub.s32 0, %v386
    %v388 = vrot.slane %v99, %v387
    %v397 = vadd.f32 %v341, %v360
    %v398 = vadd.f32 %v342, %v364
    %v399 = vadd.f32 %v343, %v368
    %v400 = vadd.f32 %v344, %v372
    %v401 = vadd.f32 %v345, %v376
    %v402 = vadd.f32 %v346, %v380
    %v403 = vadd.f32 %v347, %v384
    %v404 = vadd.f32 %v348, %v388
    %v405 = vmul.f32 %v397, %v397
    %v406 = vmul.f32 %v398, %v398
    %v407 = vmul.f32 %v399, %v399
    %v408 = vmul.f32 %v400, %v400
    %v409 = vmul.f32 %v401, %v401
    %v410 = vmul.f32 %v402, %v402
    %v411 = vmul.f32 %v403, %v403
    %v412 = vmul.f32 %v404, %v404
    %v413 = vsel %vm100, %v405, 0.0
    %414 = vadd.xlane.f32.xlu0 %v413
    %v415 = vpop.xlane.xlu0 %414
    %v416 = vsel %vm100, %v406, 0.0
    %417 = vadd.xlane.f32.xlu0 %v416
    %v418 = vpop.xlane.xlu0 %417
    %v419 = vsel %vm100, %v407, 0.0
    %420 = vadd.xlane.f32.xlu0 %v419
    %v421 = vpop.xlane.xlu0 %420
    %v422 = vsel %vm100, %v408, 0.0
    %423 = vadd.xlane.f32.xlu0 %v422
    %v424 = vpop.xlane.xlu0 %423
    %v425 = vsel %vm100, %v409, 0.0
    %426 = vadd.xlane.f32.xlu0 %v425
    %v427 = vpop.xlane.xlu0 %426
    %v428 = vsel %vm100, %v410, 0.0
    %429 = vadd.xlane.f32.xlu0 %v428
    %v430 = vpop.xlane.xlu0 %429
    %v431 = vsel %vm100, %v411, 0.0
    %432 = vadd.xlane.f32.xlu0 %v431
    %v433 = vpop.xlane.xlu0 %432
    %v434 = vsel %vm100, %v412, 0.0
    %435 = vadd.xlane.f32.xlu0 %v434
    %v436 = vpop.xlane.xlu0 %435
    %v437 = vmax.f32 %v415, 1e-24
    %v438 = vmax.f32 %v418, 1e-24
    %v439 = vmax.f32 %v421, 1e-24
    %v440 = vmax.f32 %v424, 1e-24
    %v441 = vmax.f32 %v427, 1e-24
    %v442 = vmax.f32 %v430, 1e-24
    %v443 = vmax.f32 %v433, 1e-24
    %v444 = vmax.f32 %v436, 1e-24
    %v445 = vrsqrt.pop %v437
    %v446 = vrsqrt.pop %v438
    %v447 = vrsqrt.pop %v439
    %v448 = vrsqrt.pop %v440
    %v449 = vrsqrt.pop %v441
    %v450 = vrsqrt.pop %v442
    %v451 = vrsqrt.pop %v443
    %v452 = vrsqrt.pop %v444
    %v453 = vmul.f32 %v397, %v445
    %v454 = vmul.f32 %v398, %v446
    %v455 = vmul.f32 %v399, %v447
    %v456 = vmul.f32 %v400, %v448
    %v457 = vmul.f32 %v401, %v449
    %v458 = vmul.f32 %v402, %v450
    %v459 = vmul.f32 %v403, %v451
    %v460 = vmul.f32 %v404, %v452
    %v461 = vld [vmem:[#allocation8] sm:$0xff]
    %v462 = vld [vmem:[#allocation8 + $0x8] sm:$0xff]
    %v463 = vld [vmem:[#allocation8 + $0x10] sm:$0xff]
    %v464 = vld [vmem:[#allocation8 + $0x18] sm:$0xff]
    %v465 = vld [vmem:[#allocation8 + $0x20] sm:$0xff]
    %v466 = vld [vmem:[#allocation8 + $0x28] sm:$0xff]
    %v467 = vld [vmem:[#allocation8 + $0x30] sm:$0xff]
    %v468 = vld [vmem:[#allocation8 + $0x38] sm:$0xff]
    %v469 = vld [vmem:[#allocation8 + $0x40] sm:$0xff]
    %v470 = vld [vmem:[#allocation8 + $0x48] sm:$0xff]
    %v471 = vld [vmem:[#allocation8 + $0x50] sm:$0xff]
    %v472 = vld [vmem:[#allocation8 + $0x58] sm:$0xff]
    %v473 = vld [vmem:[#allocation8 + $0x60] sm:$0xff]
    %v474 = vld [vmem:[#allocation8 + $0x68] sm:$0xff]
    %v475 = vld [vmem:[#allocation8 + $0x70] sm:$0xff]
    %v476 = vld [vmem:[#allocation8 + $0x78] sm:$0xff]
    %v477 = vld [vmem:[#allocation8 + $0x80] sm:$0xff]
    %v478 = vld [vmem:[#allocation8 + $0x88] sm:$0xff]
    %v479 = vld [vmem:[#allocation8 + $0x90] sm:$0xff]
    %v480 = vld [vmem:[#allocation8 + $0x98] sm:$0xff]
    %v481 = vld [vmem:[#allocation8 + $0xa0] sm:$0xff]
    %v482 = vld [vmem:[#allocation8 + $0xa8] sm:$0xff]
    %v483 = vld [vmem:[#allocation8 + $0xb0] sm:$0xff]
    %v484 = vld [vmem:[#allocation8 + $0xb8] sm:$0xff]
    %v485 = vld [vmem:[#allocation8 + $0xc0] sm:$0xff]
    %v486 = vld [vmem:[#allocation8 + $0xc8] sm:$0xff]
    %v487 = vld [vmem:[#allocation8 + $0xd0] sm:$0xff]
    %v488 = vld [vmem:[#allocation8 + $0xd8] sm:$0xff]
    %v489 = vld [vmem:[#allocation8 + $0xe0] sm:$0xff]
    %v490 = vld [vmem:[#allocation8 + $0xe8] sm:$0xff]
    %v491 = vld [vmem:[#allocation8 + $0xf0] sm:$0xff]
    %v492 = vld [vmem:[#allocation8 + $0xf8] sm:$0xff]
    %v493 = vmul.f32 %v461, %v461
    %v494 = vmul.f32 %v462, %v462
    %v495 = vmul.f32 %v463, %v463
    %v496 = vmul.f32 %v464, %v464
    %v497 = vmul.f32 %v465, %v465
    %v498 = vmul.f32 %v466, %v466
    %v499 = vmul.f32 %v467, %v467
    %v500 = vmul.f32 %v468, %v468
    %v501 = vmul.f32 %v469, %v469
    %v502 = vmul.f32 %v470, %v470
    %v503 = vmul.f32 %v471, %v471
    %v504 = vmul.f32 %v472, %v472
    %v505 = vmul.f32 %v473, %v473
    %v506 = vmul.f32 %v474, %v474
    %v507 = vmul.f32 %v475, %v475
    %v508 = vmul.f32 %v476, %v476
    %v509 = vmul.f32 %v477, %v477
    %v510 = vmul.f32 %v478, %v478
    %v511 = vmul.f32 %v479, %v479
    %v512 = vmul.f32 %v480, %v480
    %v513 = vmul.f32 %v481, %v481
    %v514 = vmul.f32 %v482, %v482
    %v515 = vmul.f32 %v483, %v483
    %v516 = vmul.f32 %v484, %v484
    %v517 = vmul.f32 %v485, %v485
    %v518 = vmul.f32 %v486, %v486
    %v519 = vmul.f32 %v487, %v487
    %v520 = vmul.f32 %v488, %v488
    %v521 = vmul.f32 %v489, %v489
    %v522 = vmul.f32 %v490, %v490
    %v523 = vmul.f32 %v491, %v491
    %v524 = vmul.f32 %v492, %v492
    %v525 = vadd.f32 %v493, %v494
    %v526 = vadd.f32 %v525, %v495
    %v527 = vadd.f32 %v526, %v496
    %v528 = vrot.slane %v527, 4
    %v529 = vadd.f32 %v527, %v528
    %v530 = vrot.slane %v529, 2
    %v531 = vadd.f32 %v529, %v530
    %v532 = vrot.slane %v531, 1
    %v533 = vadd.f32 %v531, %v532
    %v534 = vadd.f32 %v497, %v498
    %v535 = vadd.f32 %v534, %v499
    %v536 = vadd.f32 %v535, %v500
    %v537 = vrot.slane %v536, 4
    %v538 = vadd.f32 %v536, %v537
    %v539 = vrot.slane %v538, 2
    %v540 = vadd.f32 %v538, %v539
    %v541 = vrot.slane %v540, 1
    %v542 = vadd.f32 %v540, %v541
    %v543 = vadd.f32 %v501, %v502
    %v544 = vadd.f32 %v543, %v503
    %v545 = vadd.f32 %v544, %v504
    %v546 = vrot.slane %v545, 4
    %v547 = vadd.f32 %v545, %v546
    %v548 = vrot.slane %v547, 2
    %v549 = vadd.f32 %v547, %v548
    %v550 = vrot.slane %v549, 1
    %v551 = vadd.f32 %v549, %v550
    %v552 = vadd.f32 %v505, %v506
    %v553 = vadd.f32 %v552, %v507
    %v554 = vadd.f32 %v553, %v508
    %v555 = vrot.slane %v554, 4
    %v556 = vadd.f32 %v554, %v555
    %v557 = vrot.slane %v556, 2
    %v558 = vadd.f32 %v556, %v557
    %v559 = vrot.slane %v558, 1
    %v560 = vadd.f32 %v558, %v559
    %v561 = vadd.f32 %v509, %v510
    %v562 = vadd.f32 %v561, %v511
    %v563 = vadd.f32 %v562, %v512
    %v564 = vrot.slane %v563, 4
    %v565 = vadd.f32 %v563, %v564
    %v566 = vrot.slane %v565, 2
    %v567 = vadd.f32 %v565, %v566
    %v568 = vrot.slane %v567, 1
    %v569 = vadd.f32 %v567, %v568
    %v570 = vadd.f32 %v513, %v514
    %v571 = vadd.f32 %v570, %v515
    %v572 = vadd.f32 %v571, %v516
    %v573 = vrot.slane %v572, 4
    %v574 = vadd.f32 %v572, %v573
    %v575 = vrot.slane %v574, 2
    %v576 = vadd.f32 %v574, %v575
    %v577 = vrot.slane %v576, 1
    %v578 = vadd.f32 %v576, %v577
    %v579 = vadd.f32 %v517, %v518
    %v580 = vadd.f32 %v579, %v519
    %v581 = vadd.f32 %v580, %v520
    %v582 = vrot.slane %v581, 4
    %v583 = vadd.f32 %v581, %v582
    %v584 = vrot.slane %v583, 2
    %v585 = vadd.f32 %v583, %v584
    %v586 = vrot.slane %v585, 1
    %v587 = vadd.f32 %v585, %v586
    %v588 = vadd.f32 %v521, %v522
    %v589 = vadd.f32 %v588, %v523
    %v590 = vadd.f32 %v589, %v524
    %v591 = vrot.slane %v590, 4
    %v592 = vadd.f32 %v590, %v591
    %v593 = vrot.slane %v592, 2
    %v594 = vadd.f32 %v592, %v593
    %v595 = vrot.slane %v594, 1
    %v596 = vadd.f32 %v594, %v595
    %v597 = vmax.f32 %v533, 1e-24
    %v598 = vmax.f32 %v542, 1e-24
    %v599 = vmax.f32 %v551, 1e-24
    %v600 = vmax.f32 %v560, 1e-24
    %v601 = vmax.f32 %v569, 1e-24
    %v602 = vmax.f32 %v578, 1e-24
    %v603 = vmax.f32 %v587, 1e-24
    %v604 = vmax.f32 %v596, 1e-24
    %v605 = vrsqrt.pop %v597
    %v606 = vrsqrt.pop %v598
    %v607 = vrsqrt.pop %v599
    %v608 = vrsqrt.pop %v600
    %v609 = vrsqrt.pop %v601
    %v610 = vrsqrt.pop %v602
    %v611 = vrsqrt.pop %v603
    %v612 = vrsqrt.pop %v604
    %v613 = vmul.f32 %v461, %v605
    %v614 = vmul.f32 %v462, %v605
    %v615 = vmul.f32 %v463, %v605
    %v616 = vmul.f32 %v464, %v605
    %v617 = vmul.f32 %v465, %v606
    %v618 = vmul.f32 %v466, %v606
    %v619 = vmul.f32 %v467, %v606
    %v620 = vmul.f32 %v468, %v606
    %v621 = vmul.f32 %v469, %v607
    %v622 = vmul.f32 %v470, %v607
    %v623 = vmul.f32 %v471, %v607
    %v624 = vmul.f32 %v472, %v607
    %v625 = vmul.f32 %v473, %v608
    %v626 = vmul.f32 %v474, %v608
    %v627 = vmul.f32 %v475, %v608
    %v628 = vmul.f32 %v476, %v608
    %v629 = vmul.f32 %v477, %v609
    %v630 = vmul.f32 %v478, %v609
    %v631 = vmul.f32 %v479, %v609
    %v632 = vmul.f32 %v480, %v609
    %v633 = vmul.f32 %v481, %v610
    %v634 = vmul.f32 %v482, %v610
    %v635 = vmul.f32 %v483, %v610
    %v636 = vmul.f32 %v484, %v610
    %v637 = vmul.f32 %v485, %v611
    %v638 = vmul.f32 %v486, %v611
    %v639 = vmul.f32 %v487, %v611
    %v640 = vmul.f32 %v488, %v611
    %v641 = vmul.f32 %v489, %v612
    %v642 = vmul.f32 %v490, %v612
    %v643 = vmul.f32 %v491, %v612
    %v644 = vmul.f32 %v492, %v612
    %vm645 = vcmask 261120
    %v647 = vsel %vm645, %v453, 0
    %649 = vmatprep.subr.mxu0 0.0
    %650 = vmatpush1.msra.mxu0 %v613
    %651 = vmatprep.subr.mxu0 0.0
    %652 = vmatpush1.msra.mxu0 %v614
    %653 = vmatprep.subr.mxu0 0.0
    %654 = vmatpush1.msra.mxu0 %v615
    %655 = vmatprep.subr.mxu0 0.0
    %656 = vmatpush1.msra.mxu0 %v616
    %657 = vmatprep.subr.mxu0 0.0
    %658 = vmatpush1.msra.mxu0 0.0
    %659 = vmatprep.subr.mxu0 0.0
    %660 = vmatpush1.msra.mxu0 0.0
    %661 = vmatprep.subr.mxu0 0.0
    %662 = vmatpush1.msra.mxu0 0.0
    %663 = vmatprep.subr.mxu0 0.0
    %664 = vmatpush1.msra.mxu0 0.0
    %665 = vmatprep.subr.mxu0 0.0
    %666 = vmatpush1.msra.mxu0 0.0
    %667 = vmatprep.subr.mxu0 0.0
    %668 = vmatpush1.msra.mxu0 0.0
    %669 = vmatprep.subr.mxu0 0.0
    %670 = vmatpush1.msra.mxu0 0.0
    %671 = vmatprep.subr.mxu0 0.0
    %672 = vmatpush1.msra.mxu0 0.0
    %673 = vmatprep.subr.mxu0 0.0
    %674 = vmatpush1.msra.mxu0 0.0
    %675 = vmatprep.subr.mxu0 0.0
    %676 = vmatpush1.msra.mxu0 0.0
    %677 = vmatprep.subr.mxu0 0.0
    %678 = vmatpush1.msra.mxu0 0.0
    %679 = vmatprep.subr.mxu0 0.0
    %680 = vmatpush1.msra.mxu0 0.0
    %681 = vmatprep.subr.mxu0 0.0
    %682 = vmatpush1.msra.mxu0 0.0
    %683 = vmatprep.subr.mxu0 0.0
    %684 = vmatpush1.msra.mxu0 0.0
    %685 = vmatprep.subr.mxu0 0.0
    %686 = vmatpush1.msra.mxu0 0.0
    %687 = vmatprep.subr.mxu0 0.0
    %688 = vmatpush1.msra.mxu0 0.0
    %689 = vmatprep.subr.mxu0 0.0
    %690 = vmatpush1.msra.mxu0 0.0
    %691 = vmatprep.subr.mxu0 0.0
    %692 = vmatpush1.msra.mxu0 0.0
    %693 = vmatprep.subr.mxu0 0.0
    %694 = vmatpush1.msra.mxu0 0.0
    %695 = vmatprep.subr.mxu0 0.0
    %696 = vmatpush1.msra.mxu0 0.0
    %697 = vmatprep.subr.mxu0 0.0
    %698 = vmatpush1.msra.mxu0 0.0
    %699 = vmatprep.subr.mxu0 0.0
    %700 = vmatpush1.msra.mxu0 0.0
    %701 = vmatprep.subr.mxu0 0.0
    %702 = vmatpush1.msra.mxu0 0.0
    %703 = vmatprep.subr.mxu0 0.0
    %704 = vmatpush1.msra.mxu0 0.0
    %705 = vmatprep.subr.mxu0 0.0
    %706 = vmatpush1.msra.mxu0 0.0
    %707 = vmatprep.subr.mxu0 0.0
    %708 = vmatpush1.msra.mxu0 0.0
    %709 = vmatprep.subr.mxu0 0.0
    %710 = vmatpush1.msra.mxu0 0.0
    %711 = vmatprep.subr.mxu0 0.0
    %712 = vmatpush1.msra.mxu0 0.0
    %713 = vmatprep.mubr.f32.mxu0 0.0
    %714 = vmatmul.mubr.f32.gmra.mrb[0].mxu0 %v647
    %v715 = vpop.f32.mrb[0].mxu0
    %v716 = vadd.f32 0.0, %v715
    %v717 = vpop.f32.mrb[0].mxu0
    %718 = vdwg.mxu0
    %v720 = vsel %vm645, %v454, 0
    %722 = vmatprep.subr.mxu0 0.0
    %723 = vmatpush1.msra.mxu0 %v617
    %724 = vmatprep.subr.mxu0 0.0
    %725 = vmatpush1.msra.mxu0 %v618
    %726 = vmatprep.subr.mxu0 0.0
    %727 = vmatpush1.msra.mxu0 %v619
    %728 = vmatprep.subr.mxu0 0.0
    %729 = vmatpush1.msra.mxu0 %v620
    %730 = vmatprep.subr.mxu0 0.0
    %731 = vmatpush1.msra.mxu0 0.0
    %732 = vmatprep.subr.mxu0 0.0
    %733 = vmatpush1.msra.mxu0 0.0
    %734 = vmatprep.subr.mxu0 0.0
    %735 = vmatpush1.msra.mxu0 0.0
    %736 = vmatprep.subr.mxu0 0.0
    %737 = vmatpush1.msra.mxu0 0.0
    %738 = vmatprep.subr.mxu0 0.0
    %739 = vmatpush1.msra.mxu0 0.0
    %740 = vmatprep.subr.mxu0 0.0
    %741 = vmatpush1.msra.mxu0 0.0
    %742 = vmatprep.subr.mxu0 0.0
    %743 = vmatpush1.msra.mxu0 0.0
    %744 = vmatprep.subr.mxu0 0.0
    %745 = vmatpush1.msra.mxu0 0.0
    %746 = vmatprep.subr.mxu0 0.0
    %747 = vmatpush1.msra.mxu0 0.0
    %748 = vmatprep.subr.mxu0 0.0
    %749 = vmatpush1.msra.mxu0 0.0
    %750 = vmatprep.subr.mxu0 0.0
    %751 = vmatpush1.msra.mxu0 0.0
    %752 = vmatprep.subr.mxu0 0.0
    %753 = vmatpush1.msra.mxu0 0.0
    %754 = vmatprep.subr.mxu0 0.0
    %755 = vmatpush1.msra.mxu0 0.0
    %756 = vmatprep.subr.mxu0 0.0
    %757 = vmatpush1.msra.mxu0 0.0
    %758 = vmatprep.subr.mxu0 0.0
    %759 = vmatpush1.msra.mxu0 0.0
    %760 = vmatprep.subr.mxu0 0.0
    %761 = vmatpush1.msra.mxu0 0.0
    %762 = vmatprep.subr.mxu0 0.0
    %763 = vmatpush1.msra.mxu0 0.0
    %764 = vmatprep.subr.mxu0 0.0
    %765 = vmatpush1.msra.mxu0 0.0
    %766 = vmatprep.subr.mxu0 0.0
    %767 = vmatpush1.msra.mxu0 0.0
    %768 = vmatprep.subr.mxu0 0.0
    %769 = vmatpush1.msra.mxu0 0.0
    %770 = vmatprep.subr.mxu0 0.0
    %771 = vmatpush1.msra.mxu0 0.0
    %772 = vmatprep.subr.mxu0 0.0
    %773 = vmatpush1.msra.mxu0 0.0
    %774 = vmatprep.subr.mxu0 0.0
    %775 = vmatpush1.msra.mxu0 0.0
    %776 = vmatprep.subr.mxu0 0.0
    %777 = vmatpush1.msra.mxu0 0.0
    %778 = vmatprep.subr.mxu0 0.0
    %779 = vmatpush1.msra.mxu0 0.0
    %780 = vmatprep.subr.mxu0 0.0
    %781 = vmatpush1.msra.mxu0 0.0
    %782 = vmatprep.subr.mxu0 0.0
    %783 = vmatpush1.msra.mxu0 0.0
    %784 = vmatprep.subr.mxu0 0.0
    %785 = vmatpush1.msra.mxu0 0.0
    %786 = vmatprep.mubr.f32.mxu0 0.0
    %787 = vmatmul.mubr.f32.gmra.mrb[0].mxu0 %v720
    %v788 = vpop.f32.mrb[0].mxu0
    %v789 = vadd.f32 0.0, %v788
    %v790 = vpop.f32.mrb[0].mxu0
    %791 = vdwg.mxu0
    %v793 = vsel %vm645, %v455, 0
    %795 = vmatprep.subr.mxu0 0.0
    %796 = vmatpush1.msra.mxu0 %v621
    %797 = vmatprep.subr.mxu0 0.0
    %798 = vmatpush1.msra.mxu0 %v622
    %799 = vmatprep.subr.mxu0 0.0
    %800 = vmatpush1.msra.mxu0 %v623
    %801 = vmatprep.subr.mxu0 0.0
    %802 = vmatpush1.msra.mxu0 %v624
    %803 = vmatprep.subr.mxu0 0.0
    %804 = vmatpush1.msra.mxu0 0.0
    %805 = vmatprep.subr.mxu0 0.0
    %806 = vmatpush1.msra.mxu0 0.0
    %807 = vmatprep.subr.mxu0 0.0
    %808 = vmatpush1.msra.mxu0 0.0
    %809 = vmatprep.subr.mxu0 0.0
    %810 = vmatpush1.msra.mxu0 0.0
    %811 = vmatprep.subr.mxu0 0.0
    %812 = vmatpush1.msra.mxu0 0.0
    %813 = vmatprep.subr.mxu0 0.0
    %814 = vmatpush1.msra.mxu0 0.0
    %815 = vmatprep.subr.mxu0 0.0
    %816 = vmatpush1.msra.mxu0 0.0
    %817 = vmatprep.subr.mxu0 0.0
    %818 = vmatpush1.msra.mxu0 0.0
    %819 = vmatprep.subr.mxu0 0.0
    %820 = vmatpush1.msra.mxu0 0.0
    %821 = vmatprep.subr.mxu0 0.0
    %822 = vmatpush1.msra.mxu0 0.0
    %823 = vmatprep.subr.mxu0 0.0
    %824 = vmatpush1.msra.mxu0 0.0
    %825 = vmatprep.subr.mxu0 0.0
    %826 = vmatpush1.msra.mxu0 0.0
    %827 = vmatprep.subr.mxu0 0.0
    %828 = vmatpush1.msra.mxu0 0.0
    %829 = vmatprep.subr.mxu0 0.0
    %830 = vmatpush1.msra.mxu0 0.0
    %831 = vmatprep.subr.mxu0 0.0
    %832 = vmatpush1.msra.mxu0 0.0
    %833 = vmatprep.subr.mxu0 0.0
    %834 = vmatpush1.msra.mxu0 0.0
    %835 = vmatprep.subr.mxu0 0.0
    %836 = vmatpush1.msra.mxu0 0.0
    %837 = vmatprep.subr.mxu0 0.0
    %838 = vmatpush1.msra.mxu0 0.0
    %839 = vmatprep.subr.mxu0 0.0
    %840 = vmatpush1.msra.mxu0 0.0
    %841 = vmatprep.subr.mxu0 0.0
    %842 = vmatpush1.msra.mxu0 0.0
    %843 = vmatprep.subr.mxu0 0.0
    %844 = vmatpush1.msra.mxu0 0.0
    %845 = vmatprep.subr.mxu0 0.0
    %846 = vmatpush1.msra.mxu0 0.0
    %847 = vmatprep.subr.mxu0 0.0
    %848 = vmatpush1.msra.mxu0 0.0
    %849 = vmatprep.subr.mxu0 0.0
    %850 = vmatpush1.msra.mxu0 0.0
    %851 = vmatprep.subr.mxu0 0.0
    %852 = vmatpush1.msra.mxu0 0.0
    %853 = vmatprep.subr.mxu0 0.0
    %854 = vmatpush1.msra.mxu0 0.0
    %855 = vmatprep.subr.mxu0 0.0
    %856 = vmatpush1.msra.mxu0 0.0
    %857 = vmatprep.subr.mxu0 0.0
    %858 = vmatpush1.msra.mxu0 0.0
    %859 = vmatprep.mubr.f32.mxu0 0.0
    %860 = vmatmul.mubr.f32.gmra.mrb[0].mxu0 %v793
    %v861 = vpop.f32.mrb[0].mxu0
    %v862 = vadd.f32 0.0, %v861
    %v863 = vpop.f32.mrb[0].mxu0
    %864 = vdwg.mxu0
    %v866 = vsel %vm645, %v456, 0
    %868 = vmatprep.subr.mxu0 0.0
    %869 = vmatpush1.msra.mxu0 %v625
    %870 = vmatprep.subr.mxu0 0.0
    %871 = vmatpush1.msra.mxu0 %v626
    %872 = vmatprep.subr.mxu0 0.0
    %873 = vmatpush1.msra.mxu0 %v627
    %874 = vmatprep.subr.mxu0 0.0
    %875 = vmatpush1.msra.mxu0 %v628
    %876 = vmatprep.subr.mxu0 0.0
    %877 = vmatpush1.msra.mxu0 0.0
    %878 = vmatprep.subr.mxu0 0.0
    %879 = vmatpush1.msra.mxu0 0.0
    %880 = vmatprep.subr.mxu0 0.0
    %881 = vmatpush1.msra.mxu0 0.0
    %882 = vmatprep.subr.mxu0 0.0
    %883 = vmatpush1.msra.mxu0 0.0
    %884 = vmatprep.subr.mxu0 0.0
    %885 = vmatpush1.msra.mxu0 0.0
    %886 = vmatprep.subr.mxu0 0.0
    %887 = vmatpush1.msra.mxu0 0.0
    %888 = vmatprep.subr.mxu0 0.0
    %889 = vmatpush1.msra.mxu0 0.0
    %890 = vmatprep.subr.mxu0 0.0
    %891 = vmatpush1.msra.mxu0 0.0
    %892 = vmatprep.subr.mxu0 0.0
    %893 = vmatpush1.msra.mxu0 0.0
    %894 = vmatprep.subr.mxu0 0.0
    %895 = vmatpush1.msra.mxu0 0.0
    %896 = vmatprep.subr.mxu0 0.0
    %897 = vmatpush1.msra.mxu0 0.0
    %898 = vmatprep.subr.mxu0 0.0
    %899 = vmatpush1.msra.mxu0 0.0
    %900 = vmatprep.subr.mxu0 0.0
    %901 = vmatpush1.msra.mxu0 0.0
    %902 = vmatprep.subr.mxu0 0.0
    %903 = vmatpush1.msra.mxu0 0.0
    %904 = vmatprep.subr.mxu0 0.0
    %905 = vmatpush1.msra.mxu0 0.0
    %906 = vmatprep.subr.mxu0 0.0
    %907 = vmatpush1.msra.mxu0 0.0
    %908 = vmatprep.subr.mxu0 0.0
    %909 = vmatpush1.msra.mxu0 0.0
    %910 = vmatprep.subr.mxu0 0.0
    %911 = vmatpush1.msra.mxu0 0.0
    %912 = vmatprep.subr.mxu0 0.0
    %913 = vmatpush1.msra.mxu0 0.0
    %914 = vmatprep.subr.mxu0 0.0
    %915 = vmatpush1.msra.mxu0 0.0
    %916 = vmatprep.subr.mxu0 0.0
    %917 = vmatpush1.msra.mxu0 0.0
    %918 = vmatprep.subr.mxu0 0.0
    %919 = vmatpush1.msra.mxu0 0.0
    %920 = vmatprep.subr.mxu0 0.0
    %921 = vmatpush1.msra.mxu0 0.0
    %922 = vmatprep.subr.mxu0 0.0
    %923 = vmatpush1.msra.mxu0 0.0
    %924 = vmatprep.subr.mxu0 0.0
    %925 = vmatpush1.msra.mxu0 0.0
    %926 = vmatprep.subr.mxu0 0.0
    %927 = vmatpush1.msra.mxu0 0.0
    %928 = vmatprep.subr.mxu0 0.0
    %929 = vmatpush1.msra.mxu0 0.0
    %930 = vmatprep.subr.mxu0 0.0
    %931 = vmatpush1.msra.mxu0 0.0
    %932 = vmatprep.mubr.f32.mxu0 0.0
    %933 = vmatmul.mubr.f32.gmra.mrb[0].mxu0 %v866
    %v934 = vpop.f32.mrb[0].mxu0
    %v935 = vadd.f32 0.0, %v934
    %v936 = vpop.f32.mrb[0].mxu0
    %937 = vdwg.mxu0
    %v939 = vsel %vm645, %v457, 0
    %941 = vmatprep.subr.mxu0 0.0
    %942 = vmatpush1.msra.mxu0 %v629
    %943 = vmatprep.subr.mxu0 0.0
    %944 = vmatpush1.msra.mxu0 %v630
    %945 = vmatprep.subr.mxu0 0.0
    %946 = vmatpush1.msra.mxu0 %v631
    %947 = vmatprep.subr.mxu0 0.0
    %948 = vmatpush1.msra.mxu0 %v632
    %949 = vmatprep.subr.mxu0 0.0
    %950 = vmatpush1.msra.mxu0 0.0
    %951 = vmatprep.subr.mxu0 0.0
    %952 = vmatpush1.msra.mxu0 0.0
    %953 = vmatprep.subr.mxu0 0.0
    %954 = vmatpush1.msra.mxu0 0.0
    %955 = vmatprep.subr.mxu0 0.0
    %956 = vmatpush1.msra.mxu0 0.0
    %957 = vmatprep.subr.mxu0 0.0
    %958 = vmatpush1.msra.mxu0 0.0
    %959 = vmatprep.subr.mxu0 0.0
    %960 = vmatpush1.msra.mxu0 0.0
    %961 = vmatprep.subr.mxu0 0.0
    %962 = vmatpush1.msra.mxu0 0.0
    %963 = vmatprep.subr.mxu0 0.0
    %964 = vmatpush1.msra.mxu0 0.0
    %965 = vmatprep.subr.mxu0 0.0
    %966 = vmatpush1.msra.mxu0 0.0
    %967 = vmatprep.subr.mxu0 0.0
    %968 = vmatpush1.msra.mxu0 0.0
    %969 = vmatprep.subr.mxu0 0.0
    %970 = vmatpush1.msra.mxu0 0.0
    %971 = vmatprep.subr.mxu0 0.0
    %972 = vmatpush1.msra.mxu0 0.0
    %973 = vmatprep.subr.mxu0 0.0
    %974 = vmatpush1.msra.mxu0 0.0
    %975 = vmatprep.subr.mxu0 0.0
    %976 = vmatpush1.msra.mxu0 0.0
    %977 = vmatprep.subr.mxu0 0.0
    %978 = vmatpush1.msra.mxu0 0.0
    %979 = vmatprep.subr.mxu0 0.0
    %980 = vmatpush1.msra.mxu0 0.0
    %981 = vmatprep.subr.mxu0 0.0
    %982 = vmatpush1.msra.mxu0 0.0
    %983 = vmatprep.subr.mxu0 0.0
    %984 = vmatpush1.msra.mxu0 0.0
    %985 = vmatprep.subr.mxu0 0.0
    %986 = vmatpush1.msra.mxu0 0.0
    %987 = vmatprep.subr.mxu0 0.0
    %988 = vmatpush1.msra.mxu0 0.0
    %989 = vmatprep.subr.mxu0 0.0
    %990 = vmatpush1.msra.mxu0 0.0
    %991 = vmatprep.subr.mxu0 0.0
    %992 = vmatpush1.msra.mxu0 0.0
    %993 = vmatprep.subr.mxu0 0.0
    %994 = vmatpush1.msra.mxu0 0.0
    %995 = vmatprep.subr.mxu0 0.0
    %996 = vmatpush1.msra.mxu0 0.0
    %997 = vmatprep.subr.mxu0 0.0
    %998 = vmatpush1.msra.mxu0 0.0
    %999 = vmatprep.subr.mxu0 0.0
    %1000 = vmatpush1.msra.mxu0 0.0
    %1001 = vmatprep.subr.mxu0 0.0
    %1002 = vmatpush1.msra.mxu0 0.0
    %1003 = vmatprep.subr.mxu0 0.0
    %1004 = vmatpush1.msra.mxu0 0.0
    %1005 = vmatprep.mubr.f32.mxu0 0.0
    %1006 = vmatmul.mubr.f32.gmra.mrb[0].mxu0 %v939
    %v1007 = vpop.f32.mrb[0].mxu0
    %v1008 = vadd.f32 0.0, %v1007
    %v1009 = vpop.f32.mrb[0].mxu0
    %1010 = vdwg.mxu0
    %v1012 = vsel %vm645, %v458, 0
    %1014 = vmatprep.subr.mxu0 0.0
    %1015 = vmatpush1.msra.mxu0 %v633
    %1016 = vmatprep.subr.mxu0 0.0
    %1017 = vmatpush1.msra.mxu0 %v634
    %1018 = vmatprep.subr.mxu0 0.0
    %1019 = vmatpush1.msra.mxu0 %v635
    %1020 = vmatprep.subr.mxu0 0.0
    %1021 = vmatpush1.msra.mxu0 %v636
    %1022 = vmatprep.subr.mxu0 0.0
    %1023 = vmatpush1.msra.mxu0 0.0
    %1024 = vmatprep.subr.mxu0 0.0
    %1025 = vmatpush1.msra.mxu0 0.0
    %1026 = vmatprep.subr.mxu0 0.0
    %1027 = vmatpush1.msra.mxu0 0.0
    %1028 = vmatprep.subr.mxu0 0.0
    %1029 = vmatpush1.msra.mxu0 0.0
    %1030 = vmatprep.subr.mxu0 0.0
    %1031 = vmatpush1.msra.mxu0 0.0
    %1032 = vmatprep.subr.mxu0 0.0
    %1033 = vmatpush1.msra.mxu0 0.0
    %1034 = vmatprep.subr.mxu0 0.0
    %1035 = vmatpush1.msra.mxu0 0.0
    %1036 = vmatprep.subr.mxu0 0.0
    %1037 = vmatpush1.msra.mxu0 0.0
    %1038 = vmatprep.subr.mxu0 0.0
    %1039 = vmatpush1.msra.mxu0 0.0
    %1040 = vmatprep.subr.mxu0 0.0
    %1041 = vmatpush1.msra.mxu0 0.0
    %1042 = vmatprep.subr.mxu0 0.0
    %1043 = vmatpush1.msra.mxu0 0.0
    %1044 = vmatprep.subr.mxu0 0.0
    %1045 = vmatpush1.msra.mxu0 0.0
    %1046 = vmatprep.subr.mxu0 0.0
    %1047 = vmatpush1.msra.mxu0 0.0
    %1048 = vmatprep.subr.mxu0 0.0
    %1049 = vmatpush1.msra.mxu0 0.0
    %1050 = vmatprep.subr.mxu0 0.0
    %1051 = vmatpush1.msra.mxu0 0.0
    %1052 = vmatprep.subr.mxu0 0.0
    %1053 = vmatpush1.msra.mxu0 0.0
    %1054 = vmatprep.subr.mxu0 0.0
    %1055 = vmatpush1.msra.mxu0 0.0
    %1056 = vmatprep.subr.mxu0 0.0
    %1057 = vmatpush1.msra.mxu0 0.0
    %1058 = vmatprep.subr.mxu0 0.0
    %1059 = vmatpush1.msra.mxu0 0.0
    %1060 = vmatprep.subr.mxu0 0.0
    %1061 = vmatpush1.msra.mxu0 0.0
    %1062 = vmatprep.subr.mxu0 0.0
    %1063 = vmatpush1.msra.mxu0 0.0
    %1064 = vmatprep.subr.mxu0 0.0
    %1065 = vmatpush1.msra.mxu0 0.0
    %1066 = vmatprep.subr.mxu0 0.0
    %1067 = vmatpush1.msra.mxu0 0.0
    %1068 = vmatprep.subr.mxu0 0.0
    %1069 = vmatpush1.msra.mxu0 0.0
    %1070 = vmatprep.subr.mxu0 0.0
    %1071 = vmatpush1.msra.mxu0 0.0
    %1072 = vmatprep.subr.mxu0 0.0
    %1073 = vmatpush1.msra.mxu0 0.0
    %1074 = vmatprep.subr.mxu0 0.0
    %1075 = vmatpush1.msra.mxu0 0.0
    %1076 = vmatprep.subr.mxu0 0.0
    %1077 = vmatpush1.msra.mxu0 0.0
    %1078 = vmatprep.mubr.f32.mxu0 0.0
    %1079 = vmatmul.mubr.f32.gmra.mrb[0].mxu0 %v1012
    %v1080 = vpop.f32.mrb[0].mxu0
    %v1081 = vadd.f32 0.0, %v1080
    %v1082 = vpop.f32.mrb[0].mxu0
    %1083 = vdwg.mxu0
    %v1085 = vsel %vm645, %v459, 0
    %1087 = vmatprep.subr.mxu0 0.0
    %1088 = vmatpush1.msra.mxu0 %v637
    %1089 = vmatprep.subr.mxu0 0.0
    %1090 = vmatpush1.msra.mxu0 %v638
    %1091 = vmatprep.subr.mxu0 0.0
    %1092 = vmatpush1.msra.mxu0 %v639
    %1093 = vmatprep.subr.mxu0 0.0
    %1094 = vmatpush1.msra.mxu0 %v640
    %1095 = vmatprep.subr.mxu0 0.0
    %1096 = vmatpush1.msra.mxu0 0.0
    %1097 = vmatprep.subr.mxu0 0.0
    %1098 = vmatpush1.msra.mxu0 0.0
    %1099 = vmatprep.subr.mxu0 0.0
    %1100 = vmatpush1.msra.mxu0 0.0
    %1101 = vmatprep.subr.mxu0 0.0
    %1102 = vmatpush1.msra.mxu0 0.0
    %1103 = vmatprep.subr.mxu0 0.0
    %1104 = vmatpush1.msra.mxu0 0.0
    %1105 = vmatprep.subr.mxu0 0.0
    %1106 = vmatpush1.msra.mxu0 0.0
    %1107 = vmatprep.subr.mxu0 0.0
    %1108 = vmatpush1.msra.mxu0 0.0
    %1109 = vmatprep.subr.mxu0 0.0
    %1110 = vmatpush1.msra.mxu0 0.0
    %1111 = vmatprep.subr.mxu0 0.0
    %1112 = vmatpush1.msra.mxu0 0.0
    %1113 = vmatprep.subr.mxu0 0.0
    %1114 = vmatpush1.msra.mxu0 0.0
    %1115 = vmatprep.subr.mxu0 0.0
    %1116 = vmatpush1.msra.mxu0 0.0
    %1117 = vmatprep.subr.mxu0 0.0
    %1118 = vmatpush1.msra.mxu0 0.0
    %1119 = vmatprep.subr.mxu0 0.0
    %1120 = vmatpush1.msra.mxu0 0.0
    %1121 = vmatprep.subr.mxu0 0.0
    %1122 = vmatpush1.msra.mxu0 0.0
    %1123 = vmatprep.subr.mxu0 0.0
    %1124 = vmatpush1.msra.mxu0 0.0
    %1125 = vmatprep.subr.mxu0 0.0
    %1126 = vmatpush1.msra.mxu0 0.0
    %1127 = vmatprep.subr.mxu0 0.0
    %1128 = vmatpush1.msra.mxu0 0.0
    %1129 = vmatprep.subr.mxu0 0.0
    %1130 = vmatpush1.msra.mxu0 0.0
    %1131 = vmatprep.subr.mxu0 0.0
    %1132 = vmatpush1.msra.mxu0 0.0
    %1133 = vmatprep.subr.mxu0 0.0
    %1134 = vmatpush1.msra.mxu0 0.0
    %1135 = vmatprep.subr.mxu0 0.0
    %1136 = vmatpush1.msra.mxu0 0.0
    %1137 = vmatprep.subr.mxu0 0.0
    %1138 = vmatpush1.msra.mxu0 0.0
    %1139 = vmatprep.subr.mxu0 0.0
    %1140 = vmatpush1.msra.mxu0 0.0
    %1141 = vmatprep.subr.mxu0 0.0
    %1142 = vmatpush1.msra.mxu0 0.0
    %1143 = vmatprep.subr.mxu0 0.0
    %1144 = vmatpush1.msra.mxu0 0.0
    %1145 = vmatprep.subr.mxu0 0.0
    %1146 = vmatpush1.msra.mxu0 0.0
    %1147 = vmatprep.subr.mxu0 0.0
    %1148 = vmatpush1.msra.mxu0 0.0
    %1149 = vmatprep.subr.mxu0 0.0
    %1150 = vmatpush1.msra.mxu0 0.0
    %1151 = vmatprep.mubr.f32.mxu0 0.0
    %1152 = vmatmul.mubr.f32.gmra.mrb[0].mxu0 %v1085
    %v1153 = vpop.f32.mrb[0].mxu0
    %v1154 = vadd.f32 0.0, %v1153
    %v1155 = vpop.f32.mrb[0].mxu0
    %1156 = vdwg.mxu0
    %v1158 = vsel %vm645, %v460, 0
    %1160 = vmatprep.subr.mxu0 0.0
    %1161 = vmatpush1.msra.mxu0 %v641
    %1162 = vmatprep.subr.mxu0 0.0
    %1163 = vmatpush1.msra.mxu0 %v642
    %1164 = vmatprep.subr.mxu0 0.0
    %1165 = vmatpush1.msra.mxu0 %v643
    %1166 = vmatprep.subr.mxu0 0.0
    %1167 = vmatpush1.msra.mxu0 %v644
    %1168 = vmatprep.subr.mxu0 0.0
    %1169 = vmatpush1.msra.mxu0 0.0
    %1170 = vmatprep.subr.mxu0 0.0
    %1171 = vmatpush1.msra.mxu0 0.0
    %1172 = vmatprep.subr.mxu0 0.0
    %1173 = vmatpush1.msra.mxu0 0.0
    %1174 = vmatprep.subr.mxu0 0.0
    %1175 = vmatpush1.msra.mxu0 0.0
    %1176 = vmatprep.subr.mxu0 0.0
    %1177 = vmatpush1.msra.mxu0 0.0
    %1178 = vmatprep.subr.mxu0 0.0
    %1179 = vmatpush1.msra.mxu0 0.0
    %1180 = vmatprep.subr.mxu0 0.0
    %1181 = vmatpush1.msra.mxu0 0.0
    %1182 = vmatprep.subr.mxu0 0.0
    %1183 = vmatpush1.msra.mxu0 0.0
    %1184 = vmatprep.subr.mxu0 0.0
    %1185 = vmatpush1.msra.mxu0 0.0
    %1186 = vmatprep.subr.mxu0 0.0
    %1187 = vmatpush1.msra.mxu0 0.0
    %1188 = vmatprep.subr.mxu0 0.0
    %1189 = vmatpush1.msra.mxu0 0.0
    %1190 = vmatprep.subr.mxu0 0.0
    %1191 = vmatpush1.msra.mxu0 0.0
    %1192 = vmatprep.subr.mxu0 0.0
    %1193 = vmatpush1.msra.mxu0 0.0
    %1194 = vmatprep.subr.mxu0 0.0
    %1195 = vmatpush1.msra.mxu0 0.0
    %1196 = vmatprep.subr.mxu0 0.0
    %1197 = vmatpush1.msra.mxu0 0.0
    %1198 = vmatprep.subr.mxu0 0.0
    %1199 = vmatpush1.msra.mxu0 0.0
    %1200 = vmatprep.subr.mxu0 0.0
    %1201 = vmatpush1.msra.mxu0 0.0
    %1202 = vmatprep.subr.mxu0 0.0
    %1203 = vmatpush1.msra.mxu0 0.0
    %1204 = vmatprep.subr.mxu0 0.0
    %1205 = vmatpush1.msra.mxu0 0.0
    %1206 = vmatprep.subr.mxu0 0.0
    %1207 = vmatpush1.msra.mxu0 0.0
    %1208 = vmatprep.subr.mxu0 0.0
    %1209 = vmatpush1.msra.mxu0 0.0
    %1210 = vmatprep.subr.mxu0 0.0
    %1211 = vmatpush1.msra.mxu0 0.0
    %1212 = vmatprep.subr.mxu0 0.0
    %1213 = vmatpush1.msra.mxu0 0.0
    %1214 = vmatprep.subr.mxu0 0.0
    %1215 = vmatpush1.msra.mxu0 0.0
    %1216 = vmatprep.subr.mxu0 0.0
    %1217 = vmatpush1.msra.mxu0 0.0
    %1218 = vmatprep.subr.mxu0 0.0
    %1219 = vmatpush1.msra.mxu0 0.0
    %1220 = vmatprep.subr.mxu0 0.0
    %1221 = vmatpush1.msra.mxu0 0.0
    %1222 = vmatprep.subr.mxu0 0.0
    %1223 = vmatpush1.msra.mxu0 0.0
    %1224 = vmatprep.mubr.f32.mxu0 0.0
    %1225 = vmatmul.mubr.f32.gmra.mrb[0].mxu0 %v1158
    %v1226 = vpop.f32.mrb[0].mxu0
    %v1227 = vadd.f32 0.0, %v1226
    %v1228 = vpop.f32.mrb[0].mxu0
    %1229 = vdwg.mxu0
    %1230 = vst.msk [vmem:[#allocation10] sm:$0xf] %vm100, %v453
    %1231 = vst.msk [vmem:[#allocation10 + $0x4] sm:$0xf] %vm100, %v454
    %1232 = vst.msk [vmem:[#allocation10 + $0x8] sm:$0xf] %vm100, %v455
    %1233 = vst.msk [vmem:[#allocation10 + $0xc] sm:$0xf] %vm100, %v456
    %1234 = vst.msk [vmem:[#allocation10 + $0x10] sm:$0xf] %vm100, %v457
    %1235 = vst.msk [vmem:[#allocation10 + $0x14] sm:$0xf] %vm100, %v458
    %1236 = vst.msk [vmem:[#allocation10 + $0x18] sm:$0xf] %vm100, %v459
    %1237 = vst.msk [vmem:[#allocation10 + $0x1c] sm:$0xf] %vm100, %v460
    %1238 = vst [vmem:[#allocation11] sm:$0xf] %v716
    %1239 = vst [vmem:[#allocation11 + $0x4] sm:$0xf] %v789
    %1240 = vst [vmem:[#allocation11 + $0x8] sm:$0xf] %v862
    %1241 = vst [vmem:[#allocation11 + $0xc] sm:$0xf] %v935
    %1242 = vst [vmem:[#allocation11 + $0x10] sm:$0xf] %v1008
    %1243 = vst [vmem:[#allocation11 + $0x14] sm:$0xf] %v1081
    %1244 = vst [vmem:[#allocation11 + $0x18] sm:$0xf] %v1154
    %1245 = vst [vmem:[#allocation11 + $0x1c] sm:$0xf] %v1227
    // Predicated region
    $region34: #{tpu_custom_call.1} parent=1 // pred_check
      _
    $region35: #{tpu_custom_call.1} parent=1 // pred_check_branch
      %1247 = sbr.rel (0) target = $region37
    $region36: #{tpu_custom_call.1} parent=1 // pred_region
      %s1249 = ssub.s32 512, 512
      %1250 = vsyncadd [#allocation4], %s1249
      %s1251 = sshll.u32 [#allocation10], 4
      %s1252 = int_to_ptr.vmem [resolvable:$true] %s1251
      %1257 = dma.vmem_to_hbm [thread:$0]  %s1252, 512, %s4, [#allocation4], 64, 64, 4
    $region37: #{tpu_custom_call.1} parent=1 // pred_fallthru
      _
    // Predicated region
    $region38: #{tpu_custom_call.1} parent=1 // pred_check
      _
    $region39: #{tpu_custom_call.1} parent=1 // pred_check_branch
      %1259 = sbr.rel (0) target = $region41
    $region40: #{tpu_custom_call.1} parent=1 // pred_region
      %s1261 = ssub.s32 512, 512
      %1262 = vsyncadd [#allocation12], %s1261
      %s1263 = sshll.u32 [#allocation11], 4
      %s1264 = int_to_ptr.vmem [resolvable:$true] %s1263
      %1269 = dma.vmem_to_hbm [thread:$0]  %s1264, 512, %s5, [#allocation12], 64, 64, 4
    $region41: #{tpu_custom_call.1} parent=1 // pred_fallthru
      _
    // Predicated region
    $region42: #{tpu_custom_call.1} parent=1 // pred_check
      _
    $region43: #{tpu_custom_call.1} parent=1 // pred_check_branch
      %1271 = sbr.rel (0) target = $region45
    $region44: #{tpu_custom_call.1} parent=1 // pred_region
      %1272 = dma.done [#allocation4], 512
    $region45: #{tpu_custom_call.1} parent=1 // pred_fallthru
      _
    // Predicated region
    $region46: #{tpu_custom_call.1} parent=1 // pred_check
      _
    $region47: #{tpu_custom_call.1} parent=1 // pred_check_branch
      %1274 = sbr.rel (0) target = $region49
    $region48: #{tpu_custom_call.1} parent=1 // pred_region
      %1275 = dma.done [#allocation12], 512
    $region49: #{tpu_custom_call.1} parent=1 // pred_fallthru
      _
    %1276 = vsyncpa [#allocation3], 1
    %1277 = vsyncpa [#allocation6], 1
    %1278 = vsyncpa [#allocation9], 1
    %1279 = vsyncpa [#allocation4], 1
    %1280 = vsyncpa [#allocation12], 1

</llo_original>
